<compile_context>
chip_gen: v7x
topology: tpu7x:2x2x1
jax: 0.10.0
libtpu: 0.0.40
codegen_flags: <defaults>
</compile_context>

<pallas_src>
import functools

import jax
import jax.numpy as jnp
import numpy as np
from jax.experimental import pallas as pl
from jax.experimental.pallas import tpu as pltpu

NO_EDGE_OFFSET_T_CONORM = -1.0  # applied when operator is a T_Conorm (max)
NO_EDGE_OFFSET_T_NORM = 2.0     # applied when operator is a T_Norm  (min)


def _round_up(v, m):
    return ((v + m - 1) // m) * m


# ----------------------------- Pallas kernel ------------------------------ #
def _fused_autoencoder_kernel(x_ref, *refs, ops, consts):
    """Fused forward of all DiffSampleLayers for one lane-tile of samples.

    Layout: samples on the 128-lane axis, features on sublanes.

    x_ref      : (F0, tN)        transposed input sample tile
    refs[:L]   : (F_{l+1}, F_l)  per-layer int8 "normal_edge" one-hot plane
    refs[L]    : (F_L, tN)       transposed output tile
    ops        : tuple of "min" / "max" per layer (static)
    consts     : per-layer value a "no_edge" connection takes after the
                 one-hot max, i.e. max(no_edge_offset, 0) (static)
    """
    num_layers = len(ops)
    sel_refs = refs[:num_layers]
    o_ref = refs[num_layers]

    act = x_ref[...]                                        # (F_l, tN) f32
    for l in range(num_layers):
        # int8 plane -> f32 -> mask once per layer (tiny, grid-invariant data).
        sel_mask = sel_refs[l][...].astype(jnp.float32) > jnp.float32(0.5)
        in_f = sel_mask.shape[1]
        const = jnp.float32(consts[l])
        # torch: max(sel_no*(0+offset), sel_norm*x) == (one-hot)
        #        where(sel_norm, max(x, 0), max(offset, 0))
        x_clamped = jnp.maximum(act, jnp.float32(0.0))      # (IN, tN)

        def contrib(j):
            # lane-broadcast of the selection column, sublane-broadcast of the
            # sample row -> (OUT, tN) slab; no 3-D intermediate is ever built.
            return jnp.where(sel_mask[:, j:j + 1],
                             x_clamped[j:j + 1, :], const)

        acc = contrib(0)                                    # exact init (j = 0)
        for j in range(1, in_f):
            c = contrib(j)
            acc = jnp.minimum(acc, c) if ops[l] == "min" else jnp.maximum(acc, c)
        act = acc                                           # (OUT, tN)
    o_ref[...] = act.astype(o_ref.dtype)


# --------------------------- tile-size heuristic --------------------------- #
def _choose_sample_tile(n_pad, feat_sizes, budget_bytes, prefer_multi_step=True):
    """Largest 128-multiple sample tile whose per-grid-step VMEM footprint
    (including (8,128)/(32,128) layout padding) fits `budget_bytes`.  When a
    single tile would cover everything, optionally cap at ~n/2 so the
    "parallel" grid axis has >=2 steps (v7x megacore sharding)."""
    f_pads = [_round_up(f, 8) for f in feat_sizes]
    # resident int8 selection planes; the pipeline still double-buffers them.
    sel_bytes = 2 * sum(
        _round_up(feat_sizes[l + 1], 32) * _round_up(feat_sizes[l], 128)
        for l in range(len(feat_sizes) - 1))

    def footprint(tn):
        io = 2 * (f_pads[0] + f_pads[-1]) * tn * 4   # double-buffered x / out blocks
        work = 3 * max(f_pads) * tn * 4              # act + relu(act) + acc slabs
        return sel_bytes + io + work

    tn = n_pad
    while tn > 128 and footprint(tn) > budget_bytes:
        tn = _round_up(tn // 2, 128)
    if prefer_multi_step and tn >= n_pad and n_pad >= 256:
        tn = max(128, ((n_pad // 2) // 128) * 128)
    return tn


# ------------------------------- wrapper ----------------------------------- #
def diffsample_autoencoder(x, sel_norm_planes, ops,
                           vmem_budget_bytes=24 * 1024 * 1024,
                           prefer_multi_step=True):
    """Fused forward pass.

    x               : (N, F0) float32 samples
    sel_norm_planes : list of (F_{l+1}, F_l) one-hot "normal_edge" planes
                      (selection[..., 1] of each layer)
    ops             : list of "min" / "max" per layer
    """
    n, f0 = x.shape
    feat_sizes = [f0] + [int(s.shape[0]) for s in sel_norm_planes]
    f_last = feat_sizes[-1]

    # value a "no_edge" connection contributes after the one-hot max.
    consts = tuple(
        max(NO_EDGE_OFFSET_T_NORM, 0.0) if op == "min"
        else max(NO_EDGE_OFFSET_T_CONORM, 0.0)
        for op in ops)

    # Samples on the 128-lane axis: transpose + pad once in the wrapper.
    xt = jnp.transpose(x)                                     # (F0, N)
    n_pad = _round_up(max(n, 128), 128)
    tn = _choose_sample_tile(n_pad, feat_sizes, vmem_budget_bytes,
                             prefer_multi_step)
    steps = pl.cdiv(n_pad, tn)
    n_pad = steps * tn
    if n_pad != n:
        xt = jnp.pad(xt, ((0, 0), (0, n_pad - n)))

    # Threshold the one-hot planes once outside the kernel; int8 cuts the
    # one-time selection DMA / resident bytes 4x vs f32.
    sel_i8 = [(jnp.asarray(s) > 0.5).astype(jnp.int8) for s in sel_norm_planes]

    in_specs = [pl.BlockSpec((f0, tn), lambda i: (0, i))]
    for s in sel_i8:
        # grid-invariant full-extent block: stays resident across steps.
        in_specs.append(pl.BlockSpec(s.shape, lambda i: (0, 0)))
    out_spec = pl.BlockSpec((f_last, tn), lambda i: (0, i))

    kernel = functools.partial(_fused_autoencoder_kernel,
                               ops=tuple(ops), consts=consts)
    out_t = pl.pallas_call(
        kernel,
        out_shape=jax.ShapeDtypeStruct((f_last, n_pad), x.dtype),
        grid=(steps,),
        in_specs=in_specs,
        out_specs=out_spec,
        compiler_params=pltpu.CompilerParams(
            dimension_semantics=("parallel",),        # shard samples across TCs (v7x)
            vmem_limit_bytes=32 * 1024 * 1024),
    )(xt, *sel_i8)
    return jnp.transpose(out_t[:, :n])                        # (N, F_last)


# --------------------------- plain-JAX glue -------------------------------- #
def gumbel_softmax_hard(key, logits, tau=1.0):
    """Forward value of F.gumbel_softmax(hard=True): one-hot argmax of
    (logits + gumbel_noise)/tau."""
    g = jax.random.gumbel(key, logits.shape, logits.dtype)
    y = (logits + g) / tau
    idx = jnp.argmax(y, axis=-1)
    return jax.nn.one_hot(idx, logits.shape[-1], dtype=logits.dtype)


def reference_autoencoder(x, layer_params):
    """Pure-jnp reference mirroring the torch forward semantics exactly."""
    for sel, op in layer_params:
        offset = NO_EDGE_OFFSET_T_NORM if op == "min" else NO_EDGE_OFFSET_T_CONORM
        etv_no = jnp.zeros_like(x) + offset                    # (N, IN)
        etv_norm = x                                           # (N, IN)
        prod = jnp.stack(                                      # (N, OUT, IN, 2)
            [sel[None, :, :, 0] * etv_no[:, None, :],
             sel[None, :, :, 1] * etv_norm[:, None, :]], axis=-1)
        edge_values = jnp.max(prod, axis=-1)                   # (N, OUT, IN)
        x = jnp.min(edge_values, -1) if op == "min" else jnp.max(edge_values, -1)
    return x


# --------------------------------- main ------------------------------------ #
if __name__ == "__main__":
    key = jax.random.PRNGKey(0)

    num_samples = 8
    in_features = 16
    hidden_sizes = [8]
    layer_sizes = [in_features, *hidden_sizes, in_features]
    # operators = [T_Norm.min, T_Conorm.max]
    operators = ["min", "max"]

    k_x, k_rest = jax.random.split(key)
    # inputs in [0, 1] like fuzzy-logic activations
    x = jax.random.uniform(k_x, (num_samples, in_features), dtype=jnp.float32)

    layer_params = []       # (full one-hot selection, op) for the reference
    sel_norm_planes = []    # "normal_edge" planes fed to the fused kernel
    for i in range(len(layer_sizes) - 1):
        k_rest, k_edges, k_gumbel = jax.random.split(k_rest, 3)
        # nn.Parameter(torch.randn(out, in, num_edge_types)) -> deterministic
        # jax init instead of torch's RNG stream.
        edges = jax.random.normal(
            k_edges, (layer_sizes[i + 1], layer_sizes[i], 2), dtype=jnp.float32)
        selection = gumbel_softmax_hard(k_gumbel, edges)
        layer_params.append((selection, operators[i]))
        sel_norm_planes.append(jnp.asarray(selection[..., 1]))

    out = diffsample_autoencoder(x, sel_norm_planes, operators)
    out = jax.block_until_ready(out)

    ref = reference_autoencoder(x, layer_params)
    assert out.shape == (num_samples, in_features)
    np.testing.assert_allclose(np.asarray(out), np.asarray(ref),
                               rtol=1e-6, atol=1e-6)
    print("KERNEL_OK")
</pallas_src>

<mosaic_0001>
module attributes {stable_mosaic.version = 11 : i64} {
  func.func @_fused_autoencoder_kernel(%arg0: i32, %arg1: memref<16x128xf32, #tpu.memory_space<vmem>>, %arg2: memref<8x16xi8, #tpu.memory_space<vmem>>, %arg3: memref<16x8xi8, #tpu.memory_space<vmem>>, %arg4: memref<16x128xf32, #tpu.memory_space<vmem>>) attributes {dimension_semantics = [#tpu.dimension_semantics<parallel>], iteration_bounds = array<i64: 1>, scalar_prefetch = 0 : i64, scratch_operands = 0 : i64, tpu.core_type = #tpu.core_type<tc>, window_params = [{transform_indices = @transform_0, window_bounds = array<i64: 16, 128>}, {pipeline_mode = #tpu.pipeline_mode<synchronous>, transform_indices = @transform_1, window_bounds = array<i64: 8, 16>}, {pipeline_mode = #tpu.pipeline_mode<synchronous>, transform_indices = @transform_2, window_bounds = array<i64: 16, 8>}, {transform_indices = @transform_3, window_bounds = array<i64: 16, 128>}]} {
    %c0 = arith.constant 0 : index
    %c0_0 = arith.constant 0 : index
    %0 = vector.load %arg1[%c0, %c0_0] : memref<16x128xf32, #tpu.memory_space<vmem>>, vector<16x128xf32>
    %c0_1 = arith.constant 0 : index
    %c0_2 = arith.constant 0 : index
    %1 = vector.load %arg2[%c0_1, %c0_2] : memref<8x16xi8, #tpu.memory_space<vmem>>, vector<8x16xi8>
    %2 = arith.sitofp %1 : vector<8x16xi8> to vector<8x16xf32>
    %cst = arith.constant 5.000000e-01 : f32
    %3 = vector.broadcast %cst : f32 to vector<8x16xf32>
    %4 = arith.cmpf ogt, %2, %3 : vector<8x16xf32>
    %cst_3 = arith.constant 0.000000e+00 : f32
    %5 = vector.broadcast %cst_3 : f32 to vector<16x128xf32>
    %6 = arith.maximumf %0, %5 : vector<16x128xf32>
    %7 = vector.extract_strided_slice %4 {offsets = [0, 0], sizes = [8, 1], strides = [1, 1]} : vector<8x16xi1> to vector<8x1xi1>
    %8 = vector.extract_strided_slice %6 {offsets = [0, 0], sizes = [1, 128], strides = [1, 1]} : vector<16x128xf32> to vector<1x128xf32>
    %cst_4 = arith.constant 2.000000e+00 : f32
    %9 = vector.shape_cast %7 : vector<8x1xi1> to vector<8x1xi1>
    %10 = vector.broadcast %9 : vector<8x1xi1> to vector<8x128xi1>
    %11 = vector.shape_cast %8 : vector<1x128xf32> to vector<1x128xf32>
    %12 = vector.broadcast %11 : vector<1x128xf32> to vector<8x128xf32>
    %13 = vector.broadcast %cst_4 : f32 to vector<8x128xf32>
    %14 = arith.select %10, %12, %13 : vector<8x128xi1>, vector<8x128xf32>
    %15 = vector.extract_strided_slice %4 {offsets = [0, 1], sizes = [8, 1], strides = [1, 1]} : vector<8x16xi1> to vector<8x1xi1>
    %16 = vector.extract_strided_slice %6 {offsets = [1, 0], sizes = [1, 128], strides = [1, 1]} : vector<16x128xf32> to vector<1x128xf32>
    %cst_5 = arith.constant 2.000000e+00 : f32
    %17 = vector.shape_cast %15 : vector<8x1xi1> to vector<8x1xi1>
    %18 = vector.broadcast %17 : vector<8x1xi1> to vector<8x128xi1>
    %19 = vector.shape_cast %16 : vector<1x128xf32> to vector<1x128xf32>
    %20 = vector.broadcast %19 : vector<1x128xf32> to vector<8x128xf32>
    %21 = vector.broadcast %cst_5 : f32 to vector<8x128xf32>
    %22 = arith.select %18, %20, %21 : vector<8x128xi1>, vector<8x128xf32>
    %23 = arith.minimumf %14, %22 : vector<8x128xf32>
    %24 = vector.extract_strided_slice %4 {offsets = [0, 2], sizes = [8, 1], strides = [1, 1]} : vector<8x16xi1> to vector<8x1xi1>
    %25 = vector.extract_strided_slice %6 {offsets = [2, 0], sizes = [1, 128], strides = [1, 1]} : vector<16x128xf32> to vector<1x128xf32>
    %cst_6 = arith.constant 2.000000e+00 : f32
    %26 = vector.shape_cast %24 : vector<8x1xi1> to vector<8x1xi1>
    %27 = vector.broadcast %26 : vector<8x1xi1> to vector<8x128xi1>
    %28 = vector.shape_cast %25 : vector<1x128xf32> to vector<1x128xf32>
    %29 = vector.broadcast %28 : vector<1x128xf32> to vector<8x128xf32>
    %30 = vector.broadcast %cst_6 : f32 to vector<8x128xf32>
    %31 = arith.select %27, %29, %30 : vector<8x128xi1>, vector<8x128xf32>
    %32 = arith.minimumf %23, %31 : vector<8x128xf32>
    %33 = vector.extract_strided_slice %4 {offsets = [0, 3], sizes = [8, 1], strides = [1, 1]} : vector<8x16xi1> to vector<8x1xi1>
    %34 = vector.extract_strided_slice %6 {offsets = [3, 0], sizes = [1, 128], strides = [1, 1]} : vector<16x128xf32> to vector<1x128xf32>
    %cst_7 = arith.constant 2.000000e+00 : f32
    %35 = vector.shape_cast %33 : vector<8x1xi1> to vector<8x1xi1>
    %36 = vector.broadcast %35 : vector<8x1xi1> to vector<8x128xi1>
    %37 = vector.shape_cast %34 : vector<1x128xf32> to vector<1x128xf32>
    %38 = vector.broadcast %37 : vector<1x128xf32> to vector<8x128xf32>
    %39 = vector.broadcast %cst_7 : f32 to vector<8x128xf32>
    %40 = arith.select %36, %38, %39 : vector<8x128xi1>, vector<8x128xf32>
    %41 = arith.minimumf %32, %40 : vector<8x128xf32>
    %42 = vector.extract_strided_slice %4 {offsets = [0, 4], sizes = [8, 1], strides = [1, 1]} : vector<8x16xi1> to vector<8x1xi1>
    %43 = vector.extract_strided_slice %6 {offsets = [4, 0], sizes = [1, 128], strides = [1, 1]} : vector<16x128xf32> to vector<1x128xf32>
    %cst_8 = arith.constant 2.000000e+00 : f32
    %44 = vector.shape_cast %42 : vector<8x1xi1> to vector<8x1xi1>
    %45 = vector.broadcast %44 : vector<8x1xi1> to vector<8x128xi1>
    %46 = vector.shape_cast %43 : vector<1x128xf32> to vector<1x128xf32>
    %47 = vector.broadcast %46 : vector<1x128xf32> to vector<8x128xf32>
    %48 = vector.broadcast %cst_8 : f32 to vector<8x128xf32>
    %49 = arith.select %45, %47, %48 : vector<8x128xi1>, vector<8x128xf32>
    %50 = arith.minimumf %41, %49 : vector<8x128xf32>
    %51 = vector.extract_strided_slice %4 {offsets = [0, 5], sizes = [8, 1], strides = [1, 1]} : vector<8x16xi1> to vector<8x1xi1>
    %52 = vector.extract_strided_slice %6 {offsets = [5, 0], sizes = [1, 128], strides = [1, 1]} : vector<16x128xf32> to vector<1x128xf32>
    %cst_9 = arith.constant 2.000000e+00 : f32
    %53 = vector.shape_cast %51 : vector<8x1xi1> to vector<8x1xi1>
    %54 = vector.broadcast %53 : vector<8x1xi1> to vector<8x128xi1>
    %55 = vector.shape_cast %52 : vector<1x128xf32> to vector<1x128xf32>
    %56 = vector.broadcast %55 : vector<1x128xf32> to vector<8x128xf32>
    %57 = vector.broadcast %cst_9 : f32 to vector<8x128xf32>
    %58 = arith.select %54, %56, %57 : vector<8x128xi1>, vector<8x128xf32>
    %59 = arith.minimumf %50, %58 : vector<8x128xf32>
    %60 = vector.extract_strided_slice %4 {offsets = [0, 6], sizes = [8, 1], strides = [1, 1]} : vector<8x16xi1> to vector<8x1xi1>
    %61 = vector.extract_strided_slice %6 {offsets = [6, 0], sizes = [1, 128], strides = [1, 1]} : vector<16x128xf32> to vector<1x128xf32>
    %cst_10 = arith.constant 2.000000e+00 : f32
    %62 = vector.shape_cast %60 : vector<8x1xi1> to vector<8x1xi1>
    %63 = vector.broadcast %62 : vector<8x1xi1> to vector<8x128xi1>
    %64 = vector.shape_cast %61 : vector<1x128xf32> to vector<1x128xf32>
    %65 = vector.broadcast %64 : vector<1x128xf32> to vector<8x128xf32>
    %66 = vector.broadcast %cst_10 : f32 to vector<8x128xf32>
    %67 = arith.select %63, %65, %66 : vector<8x128xi1>, vector<8x128xf32>
    %68 = arith.minimumf %59, %67 : vector<8x128xf32>
    %69 = vector.extract_strided_slice %4 {offsets = [0, 7], sizes = [8, 1], strides = [1, 1]} : vector<8x16xi1> to vector<8x1xi1>
    %70 = vector.extract_strided_slice %6 {offsets = [7, 0], sizes = [1, 128], strides = [1, 1]} : vector<16x128xf32> to vector<1x128xf32>
    %cst_11 = arith.constant 2.000000e+00 : f32
    %71 = vector.shape_cast %69 : vector<8x1xi1> to vector<8x1xi1>
    %72 = vector.broadcast %71 : vector<8x1xi1> to vector<8x128xi1>
    %73 = vector.shape_cast %70 : vector<1x128xf32> to vector<1x128xf32>
    %74 = vector.broadcast %73 : vector<1x128xf32> to vector<8x128xf32>
    %75 = vector.broadcast %cst_11 : f32 to vector<8x128xf32>
    %76 = arith.select %72, %74, %75 : vector<8x128xi1>, vector<8x128xf32>
    %77 = arith.minimumf %68, %76 : vector<8x128xf32>
    %78 = vector.extract_strided_slice %4 {offsets = [0, 8], sizes = [8, 1], strides = [1, 1]} : vector<8x16xi1> to vector<8x1xi1>
    %79 = vector.extract_strided_slice %6 {offsets = [8, 0], sizes = [1, 128], strides = [1, 1]} : vector<16x128xf32> to vector<1x128xf32>
    %cst_12 = arith.constant 2.000000e+00 : f32
    %80 = vector.shape_cast %78 : vector<8x1xi1> to vector<8x1xi1>
    %81 = vector.broadcast %80 : vector<8x1xi1> to vector<8x128xi1>
    %82 = vector.shape_cast %79 : vector<1x128xf32> to vector<1x128xf32>
    %83 = vector.broadcast %82 : vector<1x128xf32> to vector<8x128xf32>
    %84 = vector.broadcast %cst_12 : f32 to vector<8x128xf32>
    %85 = arith.select %81, %83, %84 : vector<8x128xi1>, vector<8x128xf32>
    %86 = arith.minimumf %77, %85 : vector<8x128xf32>
    %87 = vector.extract_strided_slice %4 {offsets = [0, 9], sizes = [8, 1], strides = [1, 1]} : vector<8x16xi1> to vector<8x1xi1>
    %88 = vector.extract_strided_slice %6 {offsets = [9, 0], sizes = [1, 128], strides = [1, 1]} : vector<16x128xf32> to vector<1x128xf32>
    %cst_13 = arith.constant 2.000000e+00 : f32
    %89 = vector.shape_cast %87 : vector<8x1xi1> to vector<8x1xi1>
    %90 = vector.broadcast %89 : vector<8x1xi1> to vector<8x128xi1>
    %91 = vector.shape_cast %88 : vector<1x128xf32> to vector<1x128xf32>
    %92 = vector.broadcast %91 : vector<1x128xf32> to vector<8x128xf32>
    %93 = vector.broadcast %cst_13 : f32 to vector<8x128xf32>
    %94 = arith.select %90, %92, %93 : vector<8x128xi1>, vector<8x128xf32>
    %95 = arith.minimumf %86, %94 : vector<8x128xf32>
    %96 = vector.extract_strided_slice %4 {offsets = [0, 10], sizes = [8, 1], strides = [1, 1]} : vector<8x16xi1> to vector<8x1xi1>
    %97 = vector.extract_strided_slice %6 {offsets = [10, 0], sizes = [1, 128], strides = [1, 1]} : vector<16x128xf32> to vector<1x128xf32>
    %cst_14 = arith.constant 2.000000e+00 : f32
    %98 = vector.shape_cast %96 : vector<8x1xi1> to vector<8x1xi1>
    %99 = vector.broadcast %98 : vector<8x1xi1> to vector<8x128xi1>
    %100 = vector.shape_cast %97 : vector<1x128xf32> to vector<1x128xf32>
    %101 = vector.broadcast %100 : vector<1x128xf32> to vector<8x128xf32>
    %102 = vector.broadcast %cst_14 : f32 to vector<8x128xf32>
    %103 = arith.select %99, %101, %102 : vector<8x128xi1>, vector<8x128xf32>
    %104 = arith.minimumf %95, %103 : vector<8x128xf32>
    %105 = vector.extract_strided_slice %4 {offsets = [0, 11], sizes = [8, 1], strides = [1, 1]} : vector<8x16xi1> to vector<8x1xi1>
    %106 = vector.extract_strided_slice %6 {offsets = [11, 0], sizes = [1, 128], strides = [1, 1]} : vector<16x128xf32> to vector<1x128xf32>
    %cst_15 = arith.constant 2.000000e+00 : f32
    %107 = vector.shape_cast %105 : vector<8x1xi1> to vector<8x1xi1>
    %108 = vector.broadcast %107 : vector<8x1xi1> to vector<8x128xi1>
    %109 = vector.shape_cast %106 : vector<1x128xf32> to vector<1x128xf32>
    %110 = vector.broadcast %109 : vector<1x128xf32> to vector<8x128xf32>
    %111 = vector.broadcast %cst_15 : f32 to vector<8x128xf32>
    %112 = arith.select %108, %110, %111 : vector<8x128xi1>, vector<8x128xf32>
    %113 = arith.minimumf %104, %112 : vector<8x128xf32>
    %114 = vector.extract_strided_slice %4 {offsets = [0, 12], sizes = [8, 1], strides = [1, 1]} : vector<8x16xi1> to vector<8x1xi1>
    %115 = vector.extract_strided_slice %6 {offsets = [12, 0], sizes = [1, 128], strides = [1, 1]} : vector<16x128xf32> to vector<1x128xf32>
    %cst_16 = arith.constant 2.000000e+00 : f32
    %116 = vector.shape_cast %114 : vector<8x1xi1> to vector<8x1xi1>
    %117 = vector.broadcast %116 : vector<8x1xi1> to vector<8x128xi1>
    %118 = vector.shape_cast %115 : vector<1x128xf32> to vector<1x128xf32>
    %119 = vector.broadcast %118 : vector<1x128xf32> to vector<8x128xf32>
    %120 = vector.broadcast %cst_16 : f32 to vector<8x128xf32>
    %121 = arith.select %117, %119, %120 : vector<8x128xi1>, vector<8x128xf32>
    %122 = arith.minimumf %113, %121 : vector<8x128xf32>
    %123 = vector.extract_strided_slice %4 {offsets = [0, 13], sizes = [8, 1], strides = [1, 1]} : vector<8x16xi1> to vector<8x1xi1>
    %124 = vector.extract_strided_slice %6 {offsets = [13, 0], sizes = [1, 128], strides = [1, 1]} : vector<16x128xf32> to vector<1x128xf32>
    %cst_17 = arith.constant 2.000000e+00 : f32
    %125 = vector.shape_cast %123 : vector<8x1xi1> to vector<8x1xi1>
    %126 = vector.broadcast %125 : vector<8x1xi1> to vector<8x128xi1>
    %127 = vector.shape_cast %124 : vector<1x128xf32> to vector<1x128xf32>
    %128 = vector.broadcast %127 : vector<1x128xf32> to vector<8x128xf32>
    %129 = vector.broadcast %cst_17 : f32 to vector<8x128xf32>
    %130 = arith.select %126, %128, %129 : vector<8x128xi1>, vector<8x128xf32>
    %131 = arith.minimumf %122, %130 : vector<8x128xf32>
    %132 = vector.extract_strided_slice %4 {offsets = [0, 14], sizes = [8, 1], strides = [1, 1]} : vector<8x16xi1> to vector<8x1xi1>
    %133 = vector.extract_strided_slice %6 {offsets = [14, 0], sizes = [1, 128], strides = [1, 1]} : vector<16x128xf32> to vector<1x128xf32>
    %cst_18 = arith.constant 2.000000e+00 : f32
    %134 = vector.shape_cast %132 : vector<8x1xi1> to vector<8x1xi1>
    %135 = vector.broadcast %134 : vector<8x1xi1> to vector<8x128xi1>
    %136 = vector.shape_cast %133 : vector<1x128xf32> to vector<1x128xf32>
    %137 = vector.broadcast %136 : vector<1x128xf32> to vector<8x128xf32>
    %138 = vector.broadcast %cst_18 : f32 to vector<8x128xf32>
    %139 = arith.select %135, %137, %138 : vector<8x128xi1>, vector<8x128xf32>
    %140 = arith.minimumf %131, %139 : vector<8x128xf32>
    %141 = vector.extract_strided_slice %4 {offsets = [0, 15], sizes = [8, 1], strides = [1, 1]} : vector<8x16xi1> to vector<8x1xi1>
    %142 = vector.extract_strided_slice %6 {offsets = [15, 0], sizes = [1, 128], strides = [1, 1]} : vector<16x128xf32> to vector<1x128xf32>
    %cst_19 = arith.constant 2.000000e+00 : f32
    %143 = vector.shape_cast %141 : vector<8x1xi1> to vector<8x1xi1>
    %144 = vector.broadcast %143 : vector<8x1xi1> to vector<8x128xi1>
    %145 = vector.shape_cast %142 : vector<1x128xf32> to vector<1x128xf32>
    %146 = vector.broadcast %145 : vector<1x128xf32> to vector<8x128xf32>
    %147 = vector.broadcast %cst_19 : f32 to vector<8x128xf32>
    %148 = arith.select %144, %146, %147 : vector<8x128xi1>, vector<8x128xf32>
    %149 = arith.minimumf %140, %148 : vector<8x128xf32>
    %c0_20 = arith.constant 0 : index
    %c0_21 = arith.constant 0 : index
    %150 = vector.load %arg3[%c0_20, %c0_21] : memref<16x8xi8, #tpu.memory_space<vmem>>, vector<16x8xi8>
    %151 = arith.sitofp %150 : vector<16x8xi8> to vector<16x8xf32>
    %cst_22 = arith.constant 5.000000e-01 : f32
    %152 = vector.broadcast %cst_22 : f32 to vector<16x8xf32>
    %153 = arith.cmpf ogt, %151, %152 : vector<16x8xf32>
    %cst_23 = arith.constant 0.000000e+00 : f32
    %154 = vector.broadcast %cst_23 : f32 to vector<8x128xf32>
    %155 = arith.maximumf %149, %154 : vector<8x128xf32>
    %156 = vector.extract_strided_slice %153 {offsets = [0, 0], sizes = [16, 1], strides = [1, 1]} : vector<16x8xi1> to vector<16x1xi1>
    %157 = vector.extract_strided_slice %155 {offsets = [0, 0], sizes = [1, 128], strides = [1, 1]} : vector<8x128xf32> to vector<1x128xf32>
    %cst_24 = arith.constant 0.000000e+00 : f32
    %158 = vector.shape_cast %156 : vector<16x1xi1> to vector<16x1xi1>
    %159 = vector.broadcast %158 : vector<16x1xi1> to vector<16x128xi1>
    %160 = vector.shape_cast %157 : vector<1x128xf32> to vector<1x128xf32>
    %161 = vector.broadcast %160 : vector<1x128xf32> to vector<16x128xf32>
    %162 = vector.broadcast %cst_24 : f32 to vector<16x128xf32>
    %163 = arith.select %159, %161, %162 : vector<16x128xi1>, vector<16x128xf32>
    %164 = vector.extract_strided_slice %153 {offsets = [0, 1], sizes = [16, 1], strides = [1, 1]} : vector<16x8xi1> to vector<16x1xi1>
    %165 = vector.extract_strided_slice %155 {offsets = [1, 0], sizes = [1, 128], strides = [1, 1]} : vector<8x128xf32> to vector<1x128xf32>
    %cst_25 = arith.constant 0.000000e+00 : f32
    %166 = vector.shape_cast %164 : vector<16x1xi1> to vector<16x1xi1>
    %167 = vector.broadcast %166 : vector<16x1xi1> to vector<16x128xi1>
    %168 = vector.shape_cast %165 : vector<1x128xf32> to vector<1x128xf32>
    %169 = vector.broadcast %168 : vector<1x128xf32> to vector<16x128xf32>
    %170 = vector.broadcast %cst_25 : f32 to vector<16x128xf32>
    %171 = arith.select %167, %169, %170 : vector<16x128xi1>, vector<16x128xf32>
    %172 = arith.maximumf %163, %171 : vector<16x128xf32>
    %173 = vector.extract_strided_slice %153 {offsets = [0, 2], sizes = [16, 1], strides = [1, 1]} : vector<16x8xi1> to vector<16x1xi1>
    %174 = vector.extract_strided_slice %155 {offsets = [2, 0], sizes = [1, 128], strides = [1, 1]} : vector<8x128xf32> to vector<1x128xf32>
    %cst_26 = arith.constant 0.000000e+00 : f32
    %175 = vector.shape_cast %173 : vector<16x1xi1> to vector<16x1xi1>
    %176 = vector.broadcast %175 : vector<16x1xi1> to vector<16x128xi1>
    %177 = vector.shape_cast %174 : vector<1x128xf32> to vector<1x128xf32>
    %178 = vector.broadcast %177 : vector<1x128xf32> to vector<16x128xf32>
    %179 = vector.broadcast %cst_26 : f32 to vector<16x128xf32>
    %180 = arith.select %176, %178, %179 : vector<16x128xi1>, vector<16x128xf32>
    %181 = arith.maximumf %172, %180 : vector<16x128xf32>
    %182 = vector.extract_strided_slice %153 {offsets = [0, 3], sizes = [16, 1], strides = [1, 1]} : vector<16x8xi1> to vector<16x1xi1>
    %183 = vector.extract_strided_slice %155 {offsets = [3, 0], sizes = [1, 128], strides = [1, 1]} : vector<8x128xf32> to vector<1x128xf32>
    %cst_27 = arith.constant 0.000000e+00 : f32
    %184 = vector.shape_cast %182 : vector<16x1xi1> to vector<16x1xi1>
    %185 = vector.broadcast %184 : vector<16x1xi1> to vector<16x128xi1>
    %186 = vector.shape_cast %183 : vector<1x128xf32> to vector<1x128xf32>
    %187 = vector.broadcast %186 : vector<1x128xf32> to vector<16x128xf32>
    %188 = vector.broadcast %cst_27 : f32 to vector<16x128xf32>
    %189 = arith.select %185, %187, %188 : vector<16x128xi1>, vector<16x128xf32>
    %190 = arith.maximumf %181, %189 : vector<16x128xf32>
    %191 = vector.extract_strided_slice %153 {offsets = [0, 4], sizes = [16, 1], strides = [1, 1]} : vector<16x8xi1> to vector<16x1xi1>
    %192 = vector.extract_strided_slice %155 {offsets = [4, 0], sizes = [1, 128], strides = [1, 1]} : vector<8x128xf32> to vector<1x128xf32>
    %cst_28 = arith.constant 0.000000e+00 : f32
    %193 = vector.shape_cast %191 : vector<16x1xi1> to vector<16x1xi1>
    %194 = vector.broadcast %193 : vector<16x1xi1> to vector<16x128xi1>
    %195 = vector.shape_cast %192 : vector<1x128xf32> to vector<1x128xf32>
    %196 = vector.broadcast %195 : vector<1x128xf32> to vector<16x128xf32>
    %197 = vector.broadcast %cst_28 : f32 to vector<16x128xf32>
    %198 = arith.select %194, %196, %197 : vector<16x128xi1>, vector<16x128xf32>
    %199 = arith.maximumf %190, %198 : vector<16x128xf32>
    %200 = vector.extract_strided_slice %153 {offsets = [0, 5], sizes = [16, 1], strides = [1, 1]} : vector<16x8xi1> to vector<16x1xi1>
    %201 = vector.extract_strided_slice %155 {offsets = [5, 0], sizes = [1, 128], strides = [1, 1]} : vector<8x128xf32> to vector<1x128xf32>
    %cst_29 = arith.constant 0.000000e+00 : f32
    %202 = vector.shape_cast %200 : vector<16x1xi1> to vector<16x1xi1>
    %203 = vector.broadcast %202 : vector<16x1xi1> to vector<16x128xi1>
    %204 = vector.shape_cast %201 : vector<1x128xf32> to vector<1x128xf32>
    %205 = vector.broadcast %204 : vector<1x128xf32> to vector<16x128xf32>
    %206 = vector.broadcast %cst_29 : f32 to vector<16x128xf32>
    %207 = arith.select %203, %205, %206 : vector<16x128xi1>, vector<16x128xf32>
    %208 = arith.maximumf %199, %207 : vector<16x128xf32>
    %209 = vector.extract_strided_slice %153 {offsets = [0, 6], sizes = [16, 1], strides = [1, 1]} : vector<16x8xi1> to vector<16x1xi1>
    %210 = vector.extract_strided_slice %155 {offsets = [6, 0], sizes = [1, 128], strides = [1, 1]} : vector<8x128xf32> to vector<1x128xf32>
    %cst_30 = arith.constant 0.000000e+00 : f32
    %211 = vector.shape_cast %209 : vector<16x1xi1> to vector<16x1xi1>
    %212 = vector.broadcast %211 : vector<16x1xi1> to vector<16x128xi1>
    %213 = vector.shape_cast %210 : vector<1x128xf32> to vector<1x128xf32>
    %214 = vector.broadcast %213 : vector<1x128xf32> to vector<16x128xf32>
    %215 = vector.broadcast %cst_30 : f32 to vector<16x128xf32>
    %216 = arith.select %212, %214, %215 : vector<16x128xi1>, vector<16x128xf32>
    %217 = arith.maximumf %208, %216 : vector<16x128xf32>
    %218 = vector.extract_strided_slice %153 {offsets = [0, 7], sizes = [16, 1], strides = [1, 1]} : vector<16x8xi1> to vector<16x1xi1>
    %219 = vector.extract_strided_slice %155 {offsets = [7, 0], sizes = [1, 128], strides = [1, 1]} : vector<8x128xf32> to vector<1x128xf32>
    %cst_31 = arith.constant 0.000000e+00 : f32
    %220 = vector.shape_cast %218 : vector<16x1xi1> to vector<16x1xi1>
    %221 = vector.broadcast %220 : vector<16x1xi1> to vector<16x128xi1>
    %222 = vector.shape_cast %219 : vector<1x128xf32> to vector<1x128xf32>
    %223 = vector.broadcast %222 : vector<1x128xf32> to vector<16x128xf32>
    %224 = vector.broadcast %cst_31 : f32 to vector<16x128xf32>
    %225 = arith.select %221, %223, %224 : vector<16x128xi1>, vector<16x128xf32>
    %226 = arith.maximumf %217, %225 : vector<16x128xf32>
    %c0_32 = arith.constant 0 : index
    %c0_33 = arith.constant 0 : index
    %227 = vector.load %arg4[%c0_32, %c0_33] : memref<16x128xf32, #tpu.memory_space<vmem>>, vector<16x128xf32>
    tpu.vector_store %arg4[%c0_32, %c0_33], %226 {strides = array<i32>} : memref<16x128xf32, #tpu.memory_space<vmem>>, vector<16x128xf32>,
    return
  }
  func.func @transform_0(%arg0: i32) -> (i32, i32) {
    %c0_i32 = arith.constant 0 : i32
    %c0_i32_0 = arith.constant 0 : i32
    return %c0_i32, %arg0 : i32, i32
  }
  func.func @transform_1(%arg0: i32) -> (i32, i32) {
    %c0_i32 = arith.constant 0 : i32
    %c0_i32_0 = arith.constant 0 : i32
    %c0_i32_1 = arith.constant 0 : i32
    return %c0_i32, %c0_i32_0 : i32, i32
  }
  func.func @transform_2(%arg0: i32) -> (i32, i32) {
    %c0_i32 = arith.constant 0 : i32
    %c0_i32_0 = arith.constant 0 : i32
    %c0_i32_1 = arith.constant 0 : i32
    return %c0_i32, %c0_i32_0 : i32, i32
  }
  func.func @transform_3(%arg0: i32) -> (i32, i32) {
    %c0_i32 = arith.constant 0 : i32
    %c0_i32_0 = arith.constant 0 : i32
    return %c0_i32, %arg0 : i32, i32
  }
}

</mosaic_0001>

<llo_original>
// kernel: tpu_custom_call.1
$region0: #{tpu_custom_call.1}
  #allocation0 [shape = 'u32[]', space=smem, size = 0x4, offset = 0x4, fixed_abs, tag = 'smem constant byte address 0x4 - core index']
  #allocation1 [shape = 'u32[144,128]{1,0:T(1,128)}', space=vmem, size = 0x12000, scoped, tag = 'internal scratch']
  %s0 = inlined_call_operand.hbm [shape: f32[16,128], index: 0, kind: input, shape index: {}]
  %s1 = inlined_call_operand.vmem [shape: s8[8,16], index: 1, kind: input, shape index: {}]
  %s2 = inlined_call_operand.vmem [shape: s8[16,8], index: 2, kind: input, shape index: {}]
  %s3 = inlined_call_operand.hbm [shape: f32[16,128], index: 3, kind: output, shape index: {}]
  %s4 = sld [smem:[#allocation0]]
  $region26: #{tpu_custom_call.1} parent=0
    _
  %s6 = ssub.s32 1, %s4
  %s7 = scalar_select 0, %s6, %s4
  $region1: #{tpu_custom_call.1} parent=0
    #allocation2 [shape = 'u8[8192]{0}', space=vmem, size = 0x2000, scoped, tag = 'input window, operand 0, single buffered']
    #allocation3 [shape = 's32[1]{0}', space=sflag, size = 0x4, scoped, tag = 'scoped memory for tpu_custom_call.1']
    #allocation4 [shape = 's32[1]{0}', space=sflag, size = 0x4, scoped, tag = 'scoped memory for tpu_custom_call.1']
    #allocation5 [shape = 'u8[8192]{0}', space=vmem, size = 0x2000, scoped, tag = 'output window, operand 0, single buffered']
    %8 = vsyncpa [#allocation3], 0
    %9 = vsyncpa [#allocation4], 0
    // Predicated region
    $region2: #{tpu_custom_call.1} parent=1 // pred_check
      _
    $region3: #{tpu_custom_call.1} parent=1 // pred_check_branch
      %11 = sbr.rel (0) target = $region5
    $region4: #{tpu_custom_call.1} parent=1 // pred_region
      %s13 = ssub.s32 256, 256
      %14 = vsyncadd [#allocation3], %s13
      %s15 = sshll.u32 [#allocation2], 4
      %s16 = int_to_ptr.vmem [resolvable:$true] %s15
      %21 = dma.hbm_to_vmem [thread:$0]  %s0, 256, %s16, [#allocation3], 128, 128, 8
    $region5: #{tpu_custom_call.1} parent=1 // pred_fallthru
      _
    // Predicated region
    $region6: #{tpu_custom_call.1} parent=1 // pred_check
      _
    $region7: #{tpu_custom_call.1} parent=1 // pred_check_branch
      %23 = sbr.rel (0) target = $region9
    $region8: #{tpu_custom_call.1} parent=1 // pred_region
      _
    $region9: #{tpu_custom_call.1} parent=1 // pred_fallthru
      _
    // Predicated region
    $region10: #{tpu_custom_call.1} parent=1 // pred_check
      _
    $region11: #{tpu_custom_call.1} parent=1 // pred_check_branch
      %25 = sbr.rel (0) target = $region13
    $region12: #{tpu_custom_call.1} parent=1 // pred_region
      _
    $region13: #{tpu_custom_call.1} parent=1 // pred_fallthru
      _
    // Predicated region
    $region14: #{tpu_custom_call.1} parent=1 // pred_check
      _
    $region15: #{tpu_custom_call.1} parent=1 // pred_check_branch
      %27 = sbr.rel (0) target = $region17
    $region16: #{tpu_custom_call.1} parent=1 // pred_region
      %28 = dma.done [#allocation3], 256
    $region17: #{tpu_custom_call.1} parent=1 // pred_fallthru
      _
    %v29 = vld [vmem:[#allocation2] sm:$0xff]
    %v30 = vld [vmem:[#allocation2 + $0x8] sm:$0xff]
    %v31 = vld [vmem:[%s1] sm:$0x3]
    %v32 = vunpack.c.0.s8 %v31
    %v33 = vcvt.s32.f32 %v32
    %vm34 = vcmp.gt.f32.partialorder %v33, 0.5
    %v35 = vmax.f32 %v29, 0.0
    %v36 = vmax.f32 %v30, 0.0
    %v37 = vsel %vm34, 1, 0
    %38 = vset.pattern.permute.xlu0 0
    %39 = vperm.xlu0 %38, %v37
    %v40 = vpop.permute.xlu0 %39
    %vm41 = vcmp.eq.s32.totalorder %v40, 1
    %v42 = vlaneseq
    %v43 = vshrl.u32 %v42, 7
    %v44 = vsub.s32 0, %v43
    %v45 = vrot.slane %v35, %v44
    %v46 = vsel %vm41, %v45, 2.0
    %47 = vset.pattern.permute.xlu0 1
    %48 = vperm.xlu0 %47, %v37
    %v49 = vpop.permute.xlu0 %48
    %vm50 = vcmp.eq.s32.totalorder %v49, 1
    %v51 = vlaneseq
    %v52 = vshrl.u32 %v51, 7
    %v53 = vsub.s32 1, %v52
    %v54 = vrot.slane %v35, %v53
    %v55 = vsel %vm50, %v54, 2.0
    %v56 = vmin.f32 %v46, %v55
    %57 = vset.pattern.permute.xlu0 2
    %58 = vperm.xlu0 %57, %v37
    %v59 = vpop.permute.xlu0 %58
    %vm60 = vcmp.eq.s32.totalorder %v59, 1
    %v61 = vlaneseq
    %v62 = vshrl.u32 %v61, 7
    %v63 = vsub.s32 2, %v62
    %v64 = vrot.slane %v35, %v63
    %v65 = vsel %vm60, %v64, 2.0
    %v66 = vmin.f32 %v56, %v65
    %67 = vset.pattern.permute.xlu0 3
    %68 = vperm.xlu0 %67, %v37
    %v69 = vpop.permute.xlu0 %68
    %vm70 = vcmp.eq.s32.totalorder %v69, 1
    %v71 = vlaneseq
    %v72 = vshrl.u32 %v71, 7
    %v73 = vsub.s32 3, %v72
    %v74 = vrot.slane %v35, %v73
    %v75 = vsel %vm70, %v74, 2.0
    %v76 = vmin.f32 %v66, %v75
    %77 = vset.pattern.permute.xlu0 4
    %78 = vperm.xlu0 %77, %v37
    %v79 = vpop.permute.xlu0 %78
    %vm80 = vcmp.eq.s32.totalorder %v79, 1
    %v81 = vlaneseq
    %v82 = vshrl.u32 %v81, 7
    %v83 = vsub.s32 4, %v82
    %v84 = vrot.slane %v35, %v83
    %v85 = vsel %vm80, %v84, 2.0
    %v86 = vmin.f32 %v76, %v85
    %87 = vset.pattern.permute.xlu0 5
    %88 = vperm.xlu0 %87, %v37
    %v89 = vpop.permute.xlu0 %88
    %vm90 = vcmp.eq.s32.totalorder %v89, 1
    %v91 = vlaneseq
    %v92 = vshrl.u32 %v91, 7
    %v93 = vsub.s32 5, %v92
    %v94 = vrot.slane %v35, %v93
    %v95 = vsel %vm90, %v94, 2.0
    %v96 = vmin.f32 %v86, %v95
    %97 = vset.pattern.permute.xlu0 6
    %98 = vperm.xlu0 %97, %v37
    %v99 = vpop.permute.xlu0 %98
    %vm100 = vcmp.eq.s32.totalorder %v99, 1
    %v101 = vlaneseq
    %v102 = vshrl.u32 %v101, 7
    %v103 = vsub.s32 6, %v102
    %v104 = vrot.slane %v35, %v103
    %v105 = vsel %vm100, %v104, 2.0
    %v106 = vmin.f32 %v96, %v105
    %107 = vset.pattern.permute.xlu0 7
    %108 = vperm.xlu0 %107, %v37
    %v109 = vpop.permute.xlu0 %108
    %vm110 = vcmp.eq.s32.totalorder %v109, 1
    %v111 = vlaneseq
    %v112 = vshrl.u32 %v111, 7
    %v113 = vsub.s32 7, %v112
    %v114 = vrot.slane %v35, %v113
    %v115 = vsel %vm110, %v114, 2.0
    %v116 = vmin.f32 %v106, %v115
    %117 = vset.pattern.permute.xlu0 8
    %118 = vperm.xlu0 %117, %v37
    %v119 = vpop.permute.xlu0 %118
    %vm120 = vcmp.eq.s32.totalorder %v119, 1
    %v121 = vlaneseq
    %v122 = vshrl.u32 %v121, 7
    %v123 = vsub.s32 0, %v122
    %v124 = vrot.slane %v36, %v123
    %v125 = vsel %vm120, %v124, 2.0
    %v126 = vmin.f32 %v116, %v125
    %127 = vset.pattern.permute.xlu0 9
    %128 = vperm.xlu0 %127, %v37
    %v129 = vpop.permute.xlu0 %128
    %vm130 = vcmp.eq.s32.totalorder %v129, 1
    %v131 = vlaneseq
    %v132 = vshrl.u32 %v131, 7
    %v133 = vsub.s32 1, %v132
    %v134 = vrot.slane %v36, %v133
    %v135 = vsel %vm130, %v134, 2.0
    %v136 = vmin.f32 %v126, %v135
    %137 = vset.pattern.permute.xlu0 10
    %138 = vperm.xlu0 %137, %v37
    %v139 = vpop.permute.xlu0 %138
    %vm140 = vcmp.eq.s32.totalorder %v139, 1
    %v141 = vlaneseq
    %v142 = vshrl.u32 %v141, 7
    %v143 = vsub.s32 2, %v142
    %v144 = vrot.slane %v36, %v143
    %v145 = vsel %vm140, %v144, 2.0
    %v146 = vmin.f32 %v136, %v145
    %147 = vset.pattern.permute.xlu0 11
    %148 = vperm.xlu0 %147, %v37
    %v149 = vpop.permute.xlu0 %148
    %vm150 = vcmp.eq.s32.totalorder %v149, 1
    %v151 = vlaneseq
    %v152 = vshrl.u32 %v151, 7
    %v153 = vsub.s32 3, %v152
    %v154 = vrot.slane %v36, %v153
    %v155 = vsel %vm150, %v154, 2.0
    %v156 = vmin.f32 %v146, %v155
    %157 = vset.pattern.permute.xlu0 12
    %158 = vperm.xlu0 %157, %v37
    %v159 = vpop.permute.xlu0 %158
    %vm160 = vcmp.eq.s32.totalorder %v159, 1
    %v161 = vlaneseq
    %v162 = vshrl.u32 %v161, 7
    %v163 = vsub.s32 4, %v162
    %v164 = vrot.slane %v36, %v163
    %v165 = vsel %vm160, %v164, 2.0
    %v166 = vmin.f32 %v156, %v165
    %167 = vset.pattern.permute.xlu0 13
    %168 = vperm.xlu0 %167, %v37
    %v169 = vpop.permute.xlu0 %168
    %vm170 = vcmp.eq.s32.totalorder %v169, 1
    %v171 = vlaneseq
    %v172 = vshrl.u32 %v171, 7
    %v173 = vsub.s32 5, %v172
    %v174 = vrot.slane %v36, %v173
    %v175 = vsel %vm170, %v174, 2.0
    %v176 = vmin.f32 %v166, %v175
    %177 = vset.pattern.permute.xlu0 14
    %178 = vperm.xlu0 %177, %v37
    %v179 = vpop.permute.xlu0 %178
    %vm180 = vcmp.eq.s32.totalorder %v179, 1
    %v181 = vlaneseq
    %v182 = vshrl.u32 %v181, 7
    %v183 = vsub.s32 6, %v182
    %v184 = vrot.slane %v36, %v183
    %v185 = vsel %vm180, %v184, 2.0
    %v186 = vmin.f32 %v176, %v185
    %187 = vset.pattern.permute.xlu0 15
    %188 = vperm.xlu0 %187, %v37
    %v189 = vpop.permute.xlu0 %188
    %vm190 = vcmp.eq.s32.totalorder %v189, 1
    %v191 = vlaneseq
    %v192 = vshrl.u32 %v191, 7
    %v193 = vsub.s32 7, %v192
    %v194 = vrot.slane %v36, %v193
    %v195 = vsel %vm190, %v194, 2.0
    %v196 = vmin.f32 %v186, %v195
    %v197 = vld [vmem:[%s2] sm:$0x3]
    %v198 = vld [vmem:[%s2 + $0x2] sm:$0x3]
    %v199 = vunpack.c.0.s8 %v197
    %v200 = vunpack.c.0.s8 %v198
    %v201 = vcvt.s32.f32 %v199
    %v202 = vcvt.s32.f32 %v200
    %vm203 = vcmp.gt.f32.partialorder %v201, 0.5
    %vm204 = vcmp.gt.f32.partialorder %v202, 0.5
    %v205 = vmax.f32 %v196, 0.0
    %v206 = vsel %vm203, 1, 0
    %v207 = vsel %vm204, 1, 0
    %208 = vset.pattern.permute.xlu0 0
    %209 = vperm.xlu0 %208, %v206
    %v210 = vpop.permute.xlu0 %209
    %211 = vset.pattern.permute.xlu0 0
    %212 = vperm.xlu0 %211, %v207
    %v213 = vpop.permute.xlu0 %212
    %vm214 = vcmp.eq.s32.totalorder %v210, 1
    %vm215 = vcmp.eq.s32.totalorder %v213, 1
    %v216 = vlaneseq
    %v217 = vshrl.u32 %v216, 7
    %v218 = vsub.s32 0, %v217
    %v219 = vrot.slane %v205, %v218
    %v220 = vsel %vm214, %v219, 0.0
    %v221 = vsel %vm215, %v219, 0.0
    %222 = vset.pattern.permute.xlu0 1
    %223 = vperm.xlu0 %222, %v206
    %v224 = vpop.permute.xlu0 %223
    %225 = vset.pattern.permute.xlu0 1
    %226 = vperm.xlu0 %225, %v207
    %v227 = vpop.permute.xlu0 %226
    %vm228 = vcmp.eq.s32.totalorder %v224, 1
    %vm229 = vcmp.eq.s32.totalorder %v227, 1
    %v230 = vlaneseq
    %v231 = vshrl.u32 %v230, 7
    %v232 = vsub.s32 1, %v231
    %v233 = vrot.slane %v205, %v232
    %v234 = vsel %vm228, %v233, 0.0
    %v235 = vsel %vm229, %v233, 0.0
    %v236 = vmax.f32 %v220, %v234
    %v237 = vmax.f32 %v221, %v235
    %238 = vset.pattern.permute.xlu0 2
    %239 = vperm.xlu0 %238, %v206
    %v240 = vpop.permute.xlu0 %239
    %241 = vset.pattern.permute.xlu0 2
    %242 = vperm.xlu0 %241, %v207
    %v243 = vpop.permute.xlu0 %242
    %vm244 = vcmp.eq.s32.totalorder %v240, 1
    %vm245 = vcmp.eq.s32.totalorder %v243, 1
    %v246 = vlaneseq
    %v247 = vshrl.u32 %v246, 7
    %v248 = vsub.s32 2, %v247
    %v249 = vrot.slane %v205, %v248
    %v250 = vsel %vm244, %v249, 0.0
    %v251 = vsel %vm245, %v249, 0.0
    %v252 = vmax.f32 %v236, %v250
    %v253 = vmax.f32 %v237, %v251
    %254 = vset.pattern.permute.xlu0 3
    %255 = vperm.xlu0 %254, %v206
    %v256 = vpop.permute.xlu0 %255
    %257 = vset.pattern.permute.xlu0 3
    %258 = vperm.xlu0 %257, %v207
    %v259 = vpop.permute.xlu0 %258
    %vm260 = vcmp.eq.s32.totalorder %v256, 1
    %vm261 = vcmp.eq.s32.totalorder %v259, 1
    %v262 = vlaneseq
    %v263 = vshrl.u32 %v262, 7
    %v264 = vsub.s32 3, %v263
    %v265 = vrot.slane %v205, %v264
    %v266 = vsel %vm260, %v265, 0.0
    %v267 = vsel %vm261, %v265, 0.0
    %v268 = vmax.f32 %v252, %v266
    %v269 = vmax.f32 %v253, %v267
    %270 = vset.pattern.permute.xlu0 4
    %271 = vperm.xlu0 %270, %v206
    %v272 = vpop.permute.xlu0 %271
    %273 = vset.pattern.permute.xlu0 4
    %274 = vperm.xlu0 %273, %v207
    %v275 = vpop.permute.xlu0 %274
    %vm276 = vcmp.eq.s32.totalorder %v272, 1
    %vm277 = vcmp.eq.s32.totalorder %v275, 1
    %v278 = vlaneseq
    %v279 = vshrl.u32 %v278, 7
    %v280 = vsub.s32 4, %v279
    %v281 = vrot.slane %v205, %v280
    %v282 = vsel %vm276, %v281, 0.0
    %v283 = vsel %vm277, %v281, 0.0
    %v284 = vmax.f32 %v268, %v282
    %v285 = vmax.f32 %v269, %v283
    %286 = vset.pattern.permute.xlu0 5
    %287 = vperm.xlu0 %286, %v206
    %v288 = vpop.permute.xlu0 %287
    %289 = vset.pattern.permute.xlu0 5
    %290 = vperm.xlu0 %289, %v207
    %v291 = vpop.permute.xlu0 %290
    %vm292 = vcmp.eq.s32.totalorder %v288, 1
    %vm293 = vcmp.eq.s32.totalorder %v291, 1
    %v294 = vlaneseq
    %v295 = vshrl.u32 %v294, 7
    %v296 = vsub.s32 5, %v295
    %v297 = vrot.slane %v205, %v296
    %v298 = vsel %vm292, %v297, 0.0
    %v299 = vsel %vm293, %v297, 0.0
    %v300 = vmax.f32 %v284, %v298
    %v301 = vmax.f32 %v285, %v299
    %302 = vset.pattern.permute.xlu0 6
    %303 = vperm.xlu0 %302, %v206
    %v304 = vpop.permute.xlu0 %303
    %305 = vset.pattern.permute.xlu0 6
    %306 = vperm.xlu0 %305, %v207
    %v307 = vpop.permute.xlu0 %306
    %vm308 = vcmp.eq.s32.totalorder %v304, 1
    %vm309 = vcmp.eq.s32.totalorder %v307, 1
    %v310 = vlaneseq
    %v311 = vshrl.u32 %v310, 7
    %v312 = vsub.s32 6, %v311
    %v313 = vrot.slane %v205, %v312
    %v314 = vsel %vm308, %v313, 0.0
    %v315 = vsel %vm309, %v313, 0.0
    %v316 = vmax.f32 %v300, %v314
    %v317 = vmax.f32 %v301, %v315
    %318 = vset.pattern.permute.xlu0 7
    %319 = vperm.xlu0 %318, %v206
    %v320 = vpop.permute.xlu0 %319
    %321 = vset.pattern.permute.xlu0 7
    %322 = vperm.xlu0 %321, %v207
    %v323 = vpop.permute.xlu0 %322
    %vm324 = vcmp.eq.s32.totalorder %v320, 1
    %vm325 = vcmp.eq.s32.totalorder %v323, 1
    %v326 = vlaneseq
    %v327 = vshrl.u32 %v326, 7
    %v328 = vsub.s32 7, %v327
    %v329 = vrot.slane %v205, %v328
    %v330 = vsel %vm324, %v329, 0.0
    %v331 = vsel %vm325, %v329, 0.0
    %v332 = vmax.f32 %v316, %v330
    %v333 = vmax.f32 %v317, %v331
    %334 = vst [vmem:[#allocation5] sm:$0xff] %v332
    %335 = vst [vmem:[#allocation5 + $0x8] sm:$0xff] %v333
    // Predicated region
    $region18: #{tpu_custom_call.1} parent=1 // pred_check
      _
    $region19: #{tpu_custom_call.1} parent=1 // pred_check_branch
      %337 = sbr.rel (0) target = $region21
    $region20: #{tpu_custom_call.1} parent=1 // pred_region
      %s339 = ssub.s32 256, 256
      %340 = vsyncadd [#allocation4], %s339
      %s341 = sshll.u32 [#allocation5], 4
      %s342 = int_to_ptr.vmem [resolvable:$true] %s341
      %347 = dma.vmem_to_hbm [thread:$0]  %s342, 256, %s3, [#allocation4], 128, 128, 8
    $region21: #{tpu_custom_call.1} parent=1 // pred_fallthru
      _
    // Predicated region
    $region22: #{tpu_custom_call.1} parent=1 // pred_check
      _
    $region23: #{tpu_custom_call.1} parent=1 // pred_check_branch
      %349 = sbr.rel (0) target = $region25
    $region24: #{tpu_custom_call.1} parent=1 // pred_region
      %350 = dma.done [#allocation4], 256
    $region25: #{tpu_custom_call.1} parent=1 // pred_fallthru
      _
    %351 = vsyncpa [#allocation3], 1
    %352 = vsyncpa [#allocation4], 1

</llo_original>
